<compile_context>
chip_gen: v5e
topology: v5e:2x2
jax: 0.10.0
libtpu: 0.0.40
codegen_flags: <defaults>
</compile_context>

<pallas_src>
import functools
import math

import jax
import jax.numpy as jnp
import numpy as np
from jax import lax
from jax.experimental import pallas as pl
from jax.experimental.pallas import tpu as pltpu

# bf16 MXU inputs: peak matmul throughput on v5e/v6e/v7x; accumulation stays f32.
MXU_DTYPE = jnp.bfloat16


def _default_vmem_limit():
    # ~75% of physical VMEM (96 MiB on v5e/v6e's 128 MiB, 48 MiB on v7x's 64 MiB).
    try:
        return int(pltpu.get_tpu_info().vmem_capacity_bytes * 3 // 4)
    except Exception:
        return 48 * 1024 * 1024


_VMEM_LIMIT = _default_vmem_limit()


def _pick(dim, pref, align=8):
    """Largest tile <= pref that divides dim and is a multiple of `align`.

    Falls back to the full dim (single block, always legal) only when no aligned
    divisor exists.  Avoids the old behaviour of silently using the full axis
    whenever `pref` did not divide it.
    """
    if dim <= pref:
        return dim
    t = (pref // align) * align
    while t >= align:
        if dim % t == 0:
            return t
        t -= align
    # TODO(synk): pad non-divisible production shapes to tile multiples instead.
    return dim


# ----------------------------------------------------------------------------
# Kernel 1: tiled matmul + bias (+ optional relu)
# ----------------------------------------------------------------------------
def _mm_bias_kernel(x_ref, w_ref, b_ref, o_ref, acc_ref, *, activation):
    k = pl.program_id(2)

    @pl.when(k == 0)
    def _():
        acc_ref[...] = jnp.zeros_like(acc_ref)

    acc_ref[...] += jnp.dot(x_ref[...].astype(MXU_DTYPE),
                            w_ref[...].astype(MXU_DTYPE),
                            preferred_element_type=jnp.float32)

    @pl.when(k == pl.num_programs(2) - 1)
    def _():
        y = acc_ref[...] + b_ref[...].astype(jnp.float32)
        if activation == "relu":
            y = jnp.maximum(y, 0.0)
        o_ref[...] = y.astype(o_ref.dtype)


def matmul_bias(x, w, b, activation="none", tm=256, tn=512, tk=512):
    M, K = x.shape
    K2, N = w.shape
    assert K == K2
    tm, tn, tk = _pick(M, tm, 8), _pick(N, tn, 128), _pick(K, tk, 128)
    return pl.pallas_call(
        functools.partial(_mm_bias_kernel, activation=activation),
        out_shape=jax.ShapeDtypeStruct((M, N), x.dtype),
        grid=(M // tm, N // tn, K // tk),
        in_specs=[
            pl.BlockSpec((tm, tk), lambda i, j, k: (i, k)),
            pl.BlockSpec((tk, tn), lambda i, j, k: (k, j)),
            pl.BlockSpec((1, tn), lambda i, j, k: (0, j)),
        ],
        out_specs=pl.BlockSpec((tm, tn), lambda i, j, k: (i, j)),
        scratch_shapes=[pltpu.VMEM((tm, tn), jnp.float32)],
        compiler_params=pltpu.CompilerParams(
            dimension_semantics=("parallel", "parallel", "arbitrary"),
            vmem_limit_bytes=_VMEM_LIMIT),
    )(x, w, b.reshape(1, N))


# ----------------------------------------------------------------------------
# Kernel 2: fused K/V sequence compression (strided Conv1d == windowed matmul)
# qkv is viewed as (Mc, c*3D); K/V windows are static 128-aligned lane slices.
# ----------------------------------------------------------------------------
def _compress_kv_kernel(qkv_ref, wck_ref, bck_ref, wcv_ref, bcv_ref,
                        kc_ref, vc_ref, *, compress_factor, d_model):
    c, D = compress_factor, d_model
    W = 3 * D  # width of one original row within the window layout
    # Build (tm, c*D) K / V window matrices with cheap lane-aligned concats, then
    # a single K=c*D matmul each (fills the MXU contraction dim).
    k_win = jnp.concatenate(
        [qkv_ref[:, j * W + D: j * W + 2 * D] for j in range(c)], axis=-1)
    v_win = jnp.concatenate(
        [qkv_ref[:, j * W + 2 * D: j * W + 3 * D] for j in range(c)], axis=-1)
    kc = jnp.dot(k_win.astype(MXU_DTYPE), wck_ref[...].astype(MXU_DTYPE),
                 preferred_element_type=jnp.float32) + bck_ref[...]
    vc = jnp.dot(v_win.astype(MXU_DTYPE), wcv_ref[...].astype(MXU_DTYPE),
                 preferred_element_type=jnp.float32) + bcv_ref[...]
    kc_ref[...] = kc.astype(kc_ref.dtype)
    vc_ref[...] = vc.astype(vc_ref.dtype)


def compress_kv(qkv, wck, bck, wcv, bcv, *, B, S, D, compress_factor, tm=512):
    c = compress_factor
    Sc = S // c
    Mc = B * Sc
    qkv_w = qkv.reshape(Mc, c * 3 * D)   # pure row-major view, no copy
    tm = _pick(Mc, tm, 8)
    # TODO(synk): at very large D the (c*D, D) compression weights should be N-tiled.
    return pl.pallas_call(
        functools.partial(_compress_kv_kernel, compress_factor=c, d_model=D),
        out_shape=(jax.ShapeDtypeStruct((Mc, D), qkv.dtype),
                   jax.ShapeDtypeStruct((Mc, D), qkv.dtype)),
        grid=(Mc // tm,),
        in_specs=[
            pl.BlockSpec((tm, c * 3 * D), lambda i: (i, 0)),
            pl.BlockSpec((c * D, D), lambda i: (0, 0)),
            pl.BlockSpec((1, D), lambda i: (0, 0)),
            pl.BlockSpec((c * D, D), lambda i: (0, 0)),
            pl.BlockSpec((1, D), lambda i: (0, 0)),
        ],
        out_specs=(pl.BlockSpec((tm, D), lambda i: (i, 0)),
                   pl.BlockSpec((tm, D), lambda i: (i, 0))),
        compiler_params=pltpu.CompilerParams(
            dimension_semantics=("parallel",),
            vmem_limit_bytes=_VMEM_LIMIT),
    )(qkv_w, wck, bck.reshape(1, D), wcv, bcv.reshape(1, D))


# ----------------------------------------------------------------------------
# Kernel 3: flash-tiled memory-compressed attention, lane-dense (B, S, D) layout
# ----------------------------------------------------------------------------
def _flash_attn_kernel(*refs, num_heads, scale, causal, compress_factor):
    if causal:
        q_ref, k_ref, v_ref, o_ref, m_scr, l_scr, acc_scr = refs
        mask_ref = None
    else:
        q_ref, k_ref, v_ref, mask_ref, o_ref, m_scr, l_scr, acc_scr = refs

    qi, ki = pl.program_id(1), pl.program_id(2)
    H = num_heads
    D = o_ref.shape[-1]
    dh = D // H
    tq = q_ref.shape[1]
    tkv = k_ref.shape[1]

    @pl.when(ki == 0)
    def _():
        m_scr[...] = jnp.full_like(m_scr, -jnp.inf)
        l_scr[...] = jnp.zeros_like(l_scr)
        acc_scr[...] = jnp.zeros_like(acc_scr)

    def compute():
        if causal:
            # Additive compressed-causal mask generated on the VPU (no HBM traffic):
            # query i may attend compressed block j iff j*compress_factor <= i.
            q_pos = qi * tq + lax.broadcasted_iota(jnp.int32, (tq, tkv), 0)
            k_pos = (ki * tkv + lax.broadcasted_iota(jnp.int32, (tq, tkv), 1)) \
                    * compress_factor
            mask = jnp.where(k_pos <= q_pos, 0.0, -1e9).astype(jnp.float32)
        else:
            mask = mask_ref[...].astype(jnp.float32)

        m_prev = m_scr[...]                      # (tq, H) f32
        l_prev = l_scr[...]
        m_parts, l_parts, alpha_parts, pv_parts = [], [], [], []
        for h in range(H):                       # q/k/v tiles DMA'd once for all heads
            sl = slice(h * dh, (h + 1) * dh)
            qh = (q_ref[0, :, sl] * scale).astype(MXU_DTYPE)   # (tq, dh)
            kh = k_ref[0, :, sl].astype(MXU_DTYPE)             # (tkv, dh)
            vh = v_ref[0, :, sl].astype(MXU_DTYPE)
            s = lax.dot_general(qh, kh, (((1,), (1,)), ((), ())),
                                preferred_element_type=jnp.float32) + mask
            m_prev_h = m_prev[:, h:h + 1]
            m_new_h = jnp.maximum(m_prev_h, jnp.max(s, axis=-1, keepdims=True))
            alpha_h = jnp.exp(m_prev_h - m_new_h)              # (tq, 1)
            p = jnp.exp(s - m_new_h)                           # f32 stats
            m_parts.append(m_new_h)
            l_parts.append(alpha_h * l_prev[:, h:h + 1]
                           + jnp.sum(p, axis=-1, keepdims=True))
            alpha_parts.append(jnp.broadcast_to(alpha_h, (tq, dh)))
            pv_parts.append(jnp.dot(p.astype(MXU_DTYPE), vh,    # bf16 p into the MXU
                                    preferred_element_type=jnp.float32))
        # Single lane-dense writes: no per-head masked partial stores / RMW.
        m_scr[...] = jnp.concatenate(m_parts, axis=-1)           # (tq, H)
        l_scr[...] = jnp.concatenate(l_parts, axis=-1)
        alpha_full = jnp.concatenate(alpha_parts, axis=-1)       # (tq, D)
        pv = jnp.concatenate(pv_parts, axis=-1)                  # (tq, D)
        acc_scr[...] = alpha_full * acc_scr[...] + pv

    if causal:
        # Skip kv tiles that are entirely masked out (first key pos > last query pos).
        pl.when(ki * tkv * compress_factor <= (qi + 1) * tq - 1)(compute)
    else:
        compute()

    @pl.when(ki == pl.num_programs(2) - 1)
    def _():
        inv_l = pl.reciprocal(l_scr[...], approx=True)           # (tq, H), EUP slot
        inv_full = jnp.concatenate(
            [jnp.broadcast_to(inv_l[:, h:h + 1], (tq, dh)) for h in range(H)], axis=-1)
        o_ref[0, :, :] = (acc_scr[...] * inv_full).astype(o_ref.dtype)


def compressed_attention(qkv, kc, vc, mask, *, B, S, D, num_heads, compress_factor,
                         causal=True, tq=256, tkv=256):
    H = num_heads
    assert D % H == 0
    dh = D // H
    Sc = kc.shape[0] // B
    scale = 1.0 / math.sqrt(dh)
    q3 = qkv.reshape(B, S, 3 * D)   # Q columns selected via BlockSpec (no slice copy)
    k3 = kc.reshape(B, Sc, D)
    v3 = vc.reshape(B, Sc, D)
    tq, tkv = _pick(S, tq, 8), _pick(Sc, tkv, 8)
    in_specs = [
        pl.BlockSpec((1, tq, D), lambda b, qi, ki: (b, qi, 0)),   # Q cols of qkv
        pl.BlockSpec((1, tkv, D), lambda b, qi, ki: (b, ki, 0)),
        pl.BlockSpec((1, tkv, D), lambda b, qi, ki: (b, ki, 0)),
    ]
    operands = [q3, k3, v3]
    if not causal:
        in_specs.append(pl.BlockSpec((tq, tkv), lambda b, qi, ki: (qi, ki)))
        operands.append(mask)
    return pl.pallas_call(
        functools.partial(_flash_attn_kernel, num_heads=H, scale=scale,
                          causal=causal, compress_factor=compress_factor),
        out_shape=jax.ShapeDtypeStruct((B, S, D), qkv.dtype),
        grid=(B, S // tq, Sc // tkv),
        in_specs=in_specs,
        out_specs=pl.BlockSpec((1, tq, D), lambda b, qi, ki: (b, qi, 0)),
        scratch_shapes=[
            pltpu.VMEM((tq, H), jnp.float32),   # running max, all heads in one pad
            pltpu.VMEM((tq, H), jnp.float32),   # running sum
            pltpu.VMEM((tq, D), jnp.float32),   # lane-dense output accumulator
        ],
        compiler_params=pltpu.CompilerParams(
            dimension_semantics=("parallel", "parallel", "arbitrary"),
            vmem_limit_bytes=_VMEM_LIMIT),
    )(*operands)


# ----------------------------------------------------------------------------
# Kernel 4: tiled matmul + bias + residual + LayerNorm epilogue (Wo -> ln1)
# ----------------------------------------------------------------------------
def _mm_bias_res_ln_kernel(x_ref, w_ref, b_ref, res_ref, g_ref, bt_ref,
                           o_ref, acc_ref, *, eps):
    k = pl.program_id(1)

    @pl.when(k == 0)
    def _():
        acc_ref[...] = jnp.zeros_like(acc_ref)

    acc_ref[...] += jnp.dot(x_ref[...].astype(MXU_DTYPE),
                            w_ref[...].astype(MXU_DTYPE),
                            preferred_element_type=jnp.float32)

    @pl.when(k == pl.num_programs(1) - 1)
    def _():
        h = acc_ref[...] + b_ref[...] + res_ref[...].astype(jnp.float32)
        mu = jnp.mean(h, axis=-1, keepdims=True)
        var = jnp.mean((h - mu) ** 2, axis=-1, keepdims=True)
        y = (h - mu) * lax.rsqrt(var + eps)
        o_ref[...] = (y * g_ref[...] + bt_ref[...]).astype(o_ref.dtype)


def matmul_bias_residual_layernorm(x, w, b, res, gamma, beta, eps=1e-5,
                                   tm=256, tk=512):
    M, K = x.shape
    K2, N = w.shape
    assert K == K2
    tm, tk = _pick(M, tm, 8), _pick(K, tk, 128)
    # TODO(synk): at production D >= 2048 on v7x (64 MiB VMEM), tile N and run LayerNorm
    # as a cheap second pass; here N is untiled because LN needs the full row.
    return pl.pallas_call(
        functools.partial(_mm_bias_res_ln_kernel, eps=eps),
        out_shape=jax.ShapeDtypeStruct((M, N), x.dtype),
        grid=(M // tm, K // tk),
        in_specs=[
            pl.BlockSpec((tm, tk), lambda i, k: (i, k)),
            pl.BlockSpec((tk, N), lambda i, k: (k, 0)),
            pl.BlockSpec((1, N), lambda i, k: (0, 0)),
            pl.BlockSpec((tm, N), lambda i, k: (i, 0)),
            pl.BlockSpec((1, N), lambda i, k: (0, 0)),
            pl.BlockSpec((1, N), lambda i, k: (0, 0)),
        ],
        out_specs=pl.BlockSpec((tm, N), lambda i, k: (i, 0)),
        scratch_shapes=[pltpu.VMEM((tm, N), jnp.float32)],
        compiler_params=pltpu.CompilerParams(
            dimension_semantics=("parallel", "arbitrary"),
            vmem_limit_bytes=_VMEM_LIMIT),
    )(x, w, b.reshape(1, N), res, gamma.reshape(1, N), beta.reshape(1, N))


# ----------------------------------------------------------------------------
# Kernel 5: fused FFN (relu) + residual + LayerNorm; (tm, 4D) stays in VMEM
# ----------------------------------------------------------------------------
def _ffn_res_ln_kernel(x_ref, w1_ref, b1_ref, w2_ref, b2_ref, g_ref, bt_ref,
                       o_ref, acc_ref, *, eps):
    f = pl.program_id(1)

    @pl.when(f == 0)
    def _():
        acc_ref[...] = jnp.zeros_like(acc_ref)

    h = jnp.dot(x_ref[...].astype(MXU_DTYPE), w1_ref[...].astype(MXU_DTYPE),
                preferred_element_type=jnp.float32) + b1_ref[...]
    h = jnp.maximum(h, 0.0)
    acc_ref[...] += jnp.dot(h.astype(MXU_DTYPE), w2_ref[...].astype(MXU_DTYPE),
                            preferred_element_type=jnp.float32)

    @pl.when(f == pl.num_programs(1) - 1)
    def _():
        y = acc_ref[...] + b2_ref[...] + x_ref[...].astype(jnp.float32)
        mu = jnp.mean(y, axis=-1, keepdims=True)
        var = jnp.mean((y - mu) ** 2, axis=-1, keepdims=True)
        yn = (y - mu) * lax.rsqrt(var + eps)
        o_ref[...] = (yn * g_ref[...] + bt_ref[...]).astype(o_ref.dtype)


def ffn_residual_layernorm(x, w1, b1, w2, b2, gamma, beta, eps=1e-5,
                           tm=256, tf=512):
    M, D = x.shape
    D2, F = w1.shape
    assert D == D2 and w2.shape == (F, D)
    tm, tf = _pick(M, tm, 8), _pick(F, tf, 128)
    return pl.pallas_call(
        functools.partial(_ffn_res_ln_kernel, eps=eps),
        out_shape=jax.ShapeDtypeStruct((M, D), x.dtype),
        grid=(M // tm, F // tf),
        in_specs=[
            pl.BlockSpec((tm, D), lambda i, f: (i, 0)),
            pl.BlockSpec((D, tf), lambda i, f: (0, f)),
            pl.BlockSpec((1, tf), lambda i, f: (0, f)),
            pl.BlockSpec((tf, D), lambda i, f: (f, 0)),
            pl.BlockSpec((1, D), lambda i, f: (0, 0)),
            pl.BlockSpec((1, D), lambda i, f: (0, 0)),
            pl.BlockSpec((1, D), lambda i, f: (0, 0)),
        ],
        out_specs=pl.BlockSpec((tm, D), lambda i, f: (i, 0)),
        scratch_shapes=[pltpu.VMEM((tm, D), jnp.float32)],
        compiler_params=pltpu.CompilerParams(
            dimension_semantics=("parallel", "arbitrary"),
            vmem_limit_bytes=_VMEM_LIMIT),
    )(x, w1, b1.reshape(1, F), w2, b2.reshape(1, D),
      gamma.reshape(1, D), beta.reshape(1, D))


# ----------------------------------------------------------------------------
# One-time parameter prep (outside the hot forward path)
# ----------------------------------------------------------------------------
def fuse_qkv_params(params):
    """Pre-concatenate Q/K/V projection weights once (avoids an HBM round trip per call)."""
    p = dict(params)
    p["wqkv"] = jnp.concatenate([params["wq"], params["wk"], params["wv"]], axis=1)
    p["bqkv"] = jnp.concatenate([params["bq"], params["bk"], params["bv"]])
    return p


# ----------------------------------------------------------------------------
# Decoder layer forward
# ----------------------------------------------------------------------------
def memory_compressed_decoder_layer(x, mask, params, *, num_heads, compress_factor,
                                    assume_compressed_causal_mask=True):
    """If assume_compressed_causal_mask=True, `mask` must equal the standard
    compressed-causal additive mask (0 / -1e9); it is then generated in-kernel and
    fully-masked kv tiles are skipped. Set False to use the provided mask array."""
    B, S, D = x.shape
    c = compress_factor
    assert S % c == 0 and D % num_heads == 0
    M = B * S
    x2 = x.reshape(M, D)

    # fused Q/K/V projection: x2 is read from HBM once for all three
    qkv = matmul_bias(x2, params["wqkv"], params["bqkv"])              # (M, 3D)

    # strided-conv compression of K and V (windowed matmul over the qkv slab)
    kc, vc = compress_kv(qkv, params["wck"], params["bck"],
                         params["wcv"], params["bcv"],
                         B=B, S=S, D=D, compress_factor=c)             # (B*Sc, D) x2

    # flash-tiled attention; Q columns pulled from qkv via BlockSpec, output lane-dense
    attn = compressed_attention(qkv, kc, vc, mask, B=B, S=S, D=D,
                                num_heads=num_heads, compress_factor=c,
                                causal=assume_compressed_causal_mask)  # (B, S, D)

    # Wo projection + dropout(p=0, identity) + residual + LayerNorm1, fused
    x1 = matmul_bias_residual_layernorm(attn.reshape(M, D), params["wo"],
                                        params["bo"], x2,
                                        params["ln1_g"], params["ln1_b"])

    # feed-forward + dropout(p=0) + residual + LayerNorm2, fused
    out = ffn_residual_layernorm(x1, params["w_ff1"], params["b_ff1"],
                                 params["w_ff2"], params["b_ff2"],
                                 params["ln2_g"], params["ln2_b"])
    return out.reshape(B, S, D)


# ----------------------------------------------------------------------------
# Pure-JAX f32 reference (mirrors the PyTorch module semantics)
# ----------------------------------------------------------------------------
def reference(x, mask, params, *, num_heads, compress_factor):
    B, S, D = x.shape
    H, c = num_heads, compress_factor
    dh, Sc = D // H, S // c
    x2 = x.reshape(B * S, D)
    skip1 = x2
    q = x2 @ params["wq"] + params["bq"]
    k = x2 @ params["wk"] + params["bk"]
    v = x2 @ params["wv"] + params["bv"]
    kc = k.reshape(B * Sc, c * D) @ params["wck"] + params["bck"]
    vc = v.reshape(B * Sc, c * D) @ params["wcv"] + params["bcv"]
    qh = q.reshape(B, S, H, dh).transpose(0, 2, 1, 3)
    kh = kc.reshape(B, Sc, H, dh).transpose(0, 2, 1, 3)
    vh = vc.reshape(B, Sc, H, dh).transpose(0, 2, 1, 3)
    s = jnp.einsum("bhqd,bhkd->bhqk", qh, kh) / math.sqrt(dh) + mask[None, None]
    p = jax.nn.softmax(s, axis=-1)
    o = jnp.einsum("bhqk,bhkd->bhqd", p, vh).transpose(0, 2, 1, 3).reshape(B * S, D)
    mha = o @ params["wo"] + params["bo"]

    def ln(h, g, b, eps=1e-5):
        mu = jnp.mean(h, -1, keepdims=True)
        var = jnp.mean((h - mu) ** 2, -1, keepdims=True)
        return (h - mu) * lax.rsqrt(var + eps) * g + b

    x1 = ln(mha + skip1, params["ln1_g"], params["ln1_b"])
    hdd = jnp.maximum(x1 @ params["w_ff1"] + params["b_ff1"], 0.0)
    ff = hdd @ params["w_ff2"] + params["b_ff2"]
    out = ln(ff + x1, params["ln2_g"], params["ln2_b"])
    return out.reshape(B, S, D)


# ----------------------------------------------------------------------------
if __name__ == "__main__":
    B, S, D = 2, 8, 128        # D chosen lane-aligned (multiple of 128)
    num_heads = 4              # head_dim = 32
    compress_factor = 2
    ffn = 4 * D
    Sc = S // compress_factor
    dropout_p = 0.0            # identity dropout -> deterministic forward

    key = jax.random.PRNGKey(0)
    keys = jax.random.split(key, 16)

    def init(k, shape, fan_in):
        bound = 1.0 / math.sqrt(fan_in)
        return jax.random.uniform(k, shape, jnp.float32, -bound, bound)

    params = {
        "wq": init(keys[0], (D, D), D), "bq": init(keys[1], (D,), D),
        "wk": init(keys[2], (D, D), D), "bk": init(keys[3], (D,), D),
        "wv": init(keys[4], (D, D), D), "bv": init(keys[5], (D,), D),
        # conv-compression weights (kernel=stride=compress_factor), stored as matmul
        "wck": init(keys[6], (compress_factor * D, D), compress_factor * D),
        "bck": init(keys[7], (D,), compress_factor * D),
        "wcv": init(keys[8], (compress_factor * D, D), compress_factor * D),
        "bcv": init(keys[9], (D,), compress_factor * D),
        "wo": init(keys[10], (D, D), D), "bo": init(keys[11], (D,), D),
        "w_ff1": init(keys[12], (D, ffn), D), "b_ff1": init(keys[13], (ffn,), D),
        "w_ff2": init(keys[14], (ffn, D), ffn), "b_ff2": init(keys[15], (D,), ffn),
        "ln1_g": jnp.ones((D,), jnp.float32), "ln1_b": jnp.zeros((D,), jnp.float32),
        "ln2_g": jnp.ones((D,), jnp.float32), "ln2_b": jnp.zeros((D,), jnp.float32),
    }
    params_fused = fuse_qkv_params(params)   # one-time prep, outside the forward

    x = jax.random.normal(jax.random.PRNGKey(1), (B, S, D), jnp.float32)
    # additive causal mask over compressed key positions: query i may attend
    # compressed block j iff j*compress_factor <= i.
    qi = jnp.arange(S)[:, None]
    kj = jnp.arange(Sc)[None, :] * compress_factor
    mask = jnp.where(kj <= qi, 0.0, -1e9).astype(jnp.float32)

    ref = reference(x, mask, params, num_heads=num_heads,
                    compress_factor=compress_factor)

    # bf16 MXU inputs (f32 accumulation) vs the f32 reference -> looser tolerance.
    TOL = 5e-2

    # Path 1: optimized causal path (mask generated in-kernel, masked tiles skipped).
    out_causal = memory_compressed_decoder_layer(
        x, mask, params_fused, num_heads=num_heads,
        compress_factor=compress_factor, assume_compressed_causal_mask=True)
    out_causal = jax.block_until_ready(out_causal)
    np.testing.assert_allclose(np.asarray(out_causal), np.asarray(ref),
                               rtol=TOL, atol=TOL)

    # Path 2: general path (arbitrary user-supplied mask, DMA'd per tile).
    out_masked = memory_compressed_decoder_layer(
        x, mask, params_fused, num_heads=num_heads,
        compress_factor=compress_factor, assume_compressed_causal_mask=False)
    out_masked = jax.block_until_ready(out_masked)
    np.testing.assert_allclose(np.asarray(out_masked), np.asarray(ref),
                               rtol=TOL, atol=TOL)

    print("KERNEL_OK")
</pallas_src>

<mosaic_0001>
module attributes {stable_mosaic.version = 11 : i64} {
  func.func @_mm_bias_kernel(%arg0: i32, %arg1: i32, %arg2: i32, %arg3: memref<16x128xf32, #tpu.memory_space<vmem>>, %arg4: memref<128x384xf32, #tpu.memory_space<vmem>>, %arg5: memref<1x384xf32, #tpu.memory_space<vmem>>, %arg6: memref<16x384xf32, #tpu.memory_space<vmem>>, %arg7: memref<16x384xf32, #tpu.memory_space<vmem>>) attributes {dimension_semantics = [#tpu.dimension_semantics<parallel>, #tpu.dimension_semantics<parallel>, #tpu.dimension_semantics<arbitrary>], iteration_bounds = array<i64: 1, 1, 1>, scalar_prefetch = 0 : i64, scratch_operands = 1 : i64, tpu.core_type = #tpu.core_type<tc>, window_params = [{transform_indices = @transform_0, window_bounds = array<i64: 16, 128>}, {transform_indices = @transform_1, window_bounds = array<i64: 128, 384>}, {transform_indices = @transform_2, window_bounds = array<i64: 1, 384>}, {transform_indices = @transform_3, window_bounds = array<i64: 16, 384>}]} {
    %c0_i32 = arith.constant 0 : i32
    %0 = arith.cmpi eq, %arg2, %c0_i32 : i32
    %1 = arith.extui %0 : i1 to i32
    %c0_i32_0 = arith.constant 0 : i32
    %2 = arith.cmpi ne, %1, %c0_i32_0 : i32
    scf.if %2 {
      %cst_10 = arith.constant 0.000000e+00 : f32
      %14 = vector.broadcast %cst_10 : f32 to vector<16x384xf32>
      %c0_11 = arith.constant 0 : index
      %c0_12 = arith.constant 0 : index
      %15 = vector.load %arg7[%c0_11, %c0_12] : memref<16x384xf32, #tpu.memory_space<vmem>>, vector<16x384xf32>
      tpu.vector_store %arg7[%c0_11, %c0_12], %14 {strides = array<i32>} : memref<16x384xf32, #tpu.memory_space<vmem>>, vector<16x384xf32>,
    } else {
    }
    %c0 = arith.constant 0 : index
    %c0_1 = arith.constant 0 : index
    %3 = vector.load %arg7[%c0, %c0_1] : memref<16x384xf32, #tpu.memory_space<vmem>>, vector<16x384xf32>
    %c0_2 = arith.constant 0 : index
    %c0_3 = arith.constant 0 : index
    %4 = vector.load %arg3[%c0_2, %c0_3] : memref<16x128xf32, #tpu.memory_space<vmem>>, vector<16x128xf32>
    %5 = arith.truncf %4 : vector<16x128xf32> to vector<16x128xbf16>
    %c0_4 = arith.constant 0 : index
    %c0_5 = arith.constant 0 : index
    %6 = vector.load %arg4[%c0_4, %c0_5] : memref<128x384xf32, #tpu.memory_space<vmem>>, vector<128x384xf32>
    %7 = arith.truncf %6 : vector<128x384xf32> to vector<128x384xbf16>
    %cst = arith.constant dense<0.000000e+00> : vector<16x384xf32>
    %8 = tpu.matmul %5, %7, %cst {dimension_numbers = #tpu.dot_dimension_numbers<[1], [0], [0], [1], [0, 0, 1, 1], [], []>} : vector<16x128xbf16>, vector<128x384xbf16>, vector<16x384xf32> -> vector<16x384xf32>
    %9 = arith.addf %3, %8 : vector<16x384xf32>
    %c0_6 = arith.constant 0 : index
    %c0_7 = arith.constant 0 : index
    %10 = vector.load %arg7[%c0_6, %c0_7] : memref<16x384xf32, #tpu.memory_space<vmem>>, vector<16x384xf32>
    tpu.vector_store %arg7[%c0_6, %c0_7], %9 {strides = array<i32>} : memref<16x384xf32, #tpu.memory_space<vmem>>, vector<16x384xf32>,
    %c0_i32_8 = arith.constant 0 : i32
    %11 = arith.cmpi eq, %arg2, %c0_i32_8 : i32
    %12 = arith.extui %11 : i1 to i32
    %c0_i32_9 = arith.constant 0 : i32
    %13 = arith.cmpi ne, %12, %c0_i32_9 : i32
    scf.if %13 {
      %c0_10 = arith.constant 0 : index
      %c0_11 = arith.constant 0 : index
      %14 = vector.load %arg7[%c0_10, %c0_11] : memref<16x384xf32, #tpu.memory_space<vmem>>, vector<16x384xf32>
      %c0_12 = arith.constant 0 : index
      %c0_13 = arith.constant 0 : index
      %15 = vector.load %arg5[%c0_12, %c0_13] : memref<1x384xf32, #tpu.memory_space<vmem>>, vector<1x384xf32>
      %16 = vector.broadcast %15 : vector<1x384xf32> to vector<16x384xf32>
      %17 = arith.addf %14, %16 : vector<16x384xf32>
      %c0_14 = arith.constant 0 : index
      %c0_15 = arith.constant 0 : index
      %18 = vector.load %arg6[%c0_14, %c0_15] : memref<16x384xf32, #tpu.memory_space<vmem>>, vector<16x384xf32>
      tpu.vector_store %arg6[%c0_14, %c0_15], %17 {strides = array<i32>} : memref<16x384xf32, #tpu.memory_space<vmem>>, vector<16x384xf32>,
    } else {
    }
    return
  }
  func.func @transform_0(%arg0: i32, %arg1: i32, %arg2: i32) -> (i32, i32) {
    %c0_i32 = arith.constant 0 : i32
    return %arg0, %arg2 : i32, i32
  }
  func.func @transform_1(%arg0: i32, %arg1: i32, %arg2: i32) -> (i32, i32) {
    %c0_i32 = arith.constant 0 : i32
    return %arg2, %arg1 : i32, i32
  }
  func.func @transform_2(%arg0: i32, %arg1: i32, %arg2: i32) -> (i32, i32) {
    %c0_i32 = arith.constant 0 : i32
    %c0_i32_0 = arith.constant 0 : i32
    return %c0_i32, %arg1 : i32, i32
  }
  func.func @transform_3(%arg0: i32, %arg1: i32, %arg2: i32) -> (i32, i32) {
    %c0_i32 = arith.constant 0 : i32
    return %arg0, %arg1 : i32, i32
  }
}

</mosaic_0001>

<llo_original>
// kernel: tpu_custom_call.1
$region0: #{tpu_custom_call.1}
  #allocation0 [shape = 'u32[]', space=smem, size = 0x4, offset = 0x4, fixed_abs, tag = 'smem constant byte address 0x4 - core index']
  #allocation1 [shape = 'u32[72,128]{1,0:T(1,128)}', space=vmem, size = 0x9000, scoped, tag = 'internal scratch']
  #allocation2 [shape = 'f32[16,384]{1,0:T(8,128)}', space=vmem, size = 0x6000, scoped, tag = 'scratch operand']
  %s0 = inlined_call_operand.hbm [shape: f32[16,128], index: 0, kind: input, shape index: {}]
  %s1 = inlined_call_operand.hbm [shape: f32[128,384], index: 1, kind: input, shape index: {}]
  %s2 = inlined_call_operand.hbm [shape: f32[1,384], index: 2, kind: input, shape index: {}]
  %s3 = inlined_call_operand.hbm [shape: f32[16,384], index: 3, kind: output, shape index: {}]
  %s4 = sld [smem:[#allocation0]]
  $region42: #{tpu_custom_call.1} parent=0
    _
  %s6 = ssub.s32 1, %s4
  %s7 = scalar_select 0, %s6, %s4
  $region1: #{tpu_custom_call.1} parent=0
    #allocation3 [shape = 'u8[8192]{0}', space=vmem, size = 0x2000, scoped, tag = 'input window, operand 0, single buffered']
    #allocation4 [shape = 's32[1]{0}', space=sflag, size = 0x4, scoped, tag = 'scoped memory for tpu_custom_call.1']
    #allocation5 [shape = 's32[1]{0}', space=sflag, size = 0x4, scoped, tag = 'scoped memory for tpu_custom_call.1']
    #allocation6 [shape = 'u8[196608]{0}', space=vmem, size = 0x30000, scoped, tag = 'input window, operand 1, single buffered']
    #allocation7 [shape = 's32[1]{0}', space=sflag, size = 0x4, scoped, tag = 'scoped memory for tpu_custom_call.1']
    #allocation8 [shape = 'u8[1536]{0}', space=vmem, size = 0x800, scoped, tag = 'input window, operand 2, single buffered']
    #allocation9 [shape = 'u8[24576]{0}', space=vmem, size = 0x6000, scoped, tag = 'output window, operand 0, single buffered']
    %8 = vsyncpa [#allocation4], 0
    %9 = vsyncpa [#allocation7], 0
    %10 = vsyncpa [#allocation5], 0
    // Predicated region
    $region2: #{tpu_custom_call.1} parent=1 // pred_check
      _
    $region3: #{tpu_custom_call.1} parent=1 // pred_check_branch
      %12 = sbr.rel (0) target = $region5
    $region4: #{tpu_custom_call.1} parent=1 // pred_region
      %14 = vsyncadd [#allocation4], 0
      %s15 = sshll.u32 %s0, 4
      %s16 = int_to_ptr.hbm [resolvable:$true] %s15
      %s17 = sshll.u32 [#allocation3], 4
      %s18 = int_to_ptr.vmem [resolvable:$true] %s17
      %23 = dma.hbm_to_vmem [thread:$0]  %s16, 256, %s18, [#allocation4], 128, 128, 8
    $region5: #{tpu_custom_call.1} parent=1 // pred_fallthru
      _
    // Predicated region
    $region6: #{tpu_custom_call.1} parent=1 // pred_check
      _
    $region7: #{tpu_custom_call.1} parent=1 // pred_check_branch
      %25 = sbr.rel (0) target = $region9
    $region8: #{tpu_custom_call.1} parent=1 // pred_region
      %27 = vsyncadd [#allocation7], 0
      %s28 = sshll.u32 %s1, 4
      %s29 = int_to_ptr.hbm [resolvable:$true] %s28
      %s30 = sshll.u32 [#allocation6], 4
      %s31 = int_to_ptr.vmem [resolvable:$true] %s30
      %36 = dma.hbm_to_vmem [thread:$0]  %s29, 6144, %s31, [#allocation7], 384, 384, 24
    $region9: #{tpu_custom_call.1} parent=1 // pred_fallthru
      _
    // Predicated region
    $region10: #{tpu_custom_call.1} parent=1 // pred_check
      _
    $region11: #{tpu_custom_call.1} parent=1 // pred_check_branch
      %38 = sbr.rel (0) target = $region13
    $region12: #{tpu_custom_call.1} parent=1 // pred_region
      %40 = vsyncadd [#allocation7], 0
      %s42 = sshll.u32 %s2, 4
      %s43 = int_to_ptr.hbm [resolvable:$true] %s42
      %s44 = sshll.u32 [#allocation8], 4
      %s45 = int_to_ptr.vmem [resolvable:$true] %s44
      %47 = dma.hbm_to_vmem [thread:$0]  %s43, 48, %s45, [#allocation7]
    $region13: #{tpu_custom_call.1} parent=1 // pred_fallthru
      _
    // Predicated region
    $region14: #{tpu_custom_call.1} parent=1 // pred_check
      _
    $region15: #{tpu_custom_call.1} parent=1 // pred_check_branch
      %49 = sbr.rel (0) target = $region17
    $region16: #{tpu_custom_call.1} parent=1 // pred_region
      %51 = dma.done [#allocation4], 256
    $region17: #{tpu_custom_call.1} parent=1 // pred_fallthru
      _
    // Predicated region
    $region18: #{tpu_custom_call.1} parent=1 // pred_check
      _
    $region19: #{tpu_custom_call.1} parent=1 // pred_check_branch
      %53 = sbr.rel (0) target = $region21
    $region20: #{tpu_custom_call.1} parent=1 // pred_region
      %55 = dma.done [#allocation7], 6144
    $region21: #{tpu_custom_call.1} parent=1 // pred_fallthru
      _
    // Predicated region
    $region22: #{tpu_custom_call.1} parent=1 // pred_check
      _
    $region23: #{tpu_custom_call.1} parent=1 // pred_check_branch
      %57 = sbr.rel (0) target = $region25
    $region24: #{tpu_custom_call.1} parent=1 // pred_region
      %59 = dma.done [#allocation7], 48
    $region25: #{tpu_custom_call.1} parent=1 // pred_fallthru
      _
    %p60 = scmp.eq.s32.totalorder 0, 0
    // Predicated region
    $region26: #{tpu_custom_call.1} parent=1 // pred_check
      %p61 = pneg %p60
    $region27: #{tpu_custom_call.1} parent=1 // pred_check_branch
      %63 = sbr.rel (%p61) target = $region29
    $region28: #{tpu_custom_call.1} parent=1 // pred_region
      %64 = vst [vmem:[#allocation2] sm:$0xff] 0.0
      %65 = vst [vmem:[#allocation2 + $0x8] sm:$0xff] 0.0
      %66 = vst [vmem:[#allocation2 + $0x10] sm:$0xff] 0.0
      %67 = vst [vmem:[#allocation2 + $0x18] sm:$0xff] 0.0
      %68 = vst [vmem:[#allocation2 + $0x20] sm:$0xff] 0.0
      %69 = vst [vmem:[#allocation2 + $0x28] sm:$0xff] 0.0
    $region29: #{tpu_custom_call.1} parent=1 // pred_fallthru
      _
    %v70 = vld [vmem:[#allocation2] sm:$0xff]
    %v71 = vld [vmem:[#allocation2 + $0x8] sm:$0xff]
    %v72 = vld [vmem:[#allocation2 + $0x10] sm:$0xff]
    %v73 = vld [vmem:[#allocation2 + $0x18] sm:$0xff]
    %v74 = vld [vmem:[#allocation2 + $0x20] sm:$0xff]
    %v75 = vld [vmem:[#allocation2 + $0x28] sm:$0xff]
    %v76 = vld [vmem:[#allocation3] sm:$0xff]
    %v77 = vld [vmem:[#allocation3 + $0x8] sm:$0xff]
    %v78 = vpack.c.bf16 %v77, %v76
    %v79 = vld [vmem:[#allocation6] sm:$0xff]
    %v80 = vld [vmem:[#allocation6 + $0x8] sm:$0xff]
    %v81 = vld [vmem:[#allocation6 + $0x10] sm:$0xff]
    %v82 = vld [vmem:[#allocation6 + $0x18] sm:$0xff]
    %v83 = vld [vmem:[#allocation6 + $0x20] sm:$0xff]
    %v84 = vld [vmem:[#allocation6 + $0x28] sm:$0xff]
    %v85 = vld [vmem:[#allocation6 + $0x30] sm:$0xff]
    %v86 = vld [vmem:[#allocation6 + $0x38] sm:$0xff]
    %v87 = vld [vmem:[#allocation6 + $0x40] sm:$0xff]
    %v88 = vld [vmem:[#allocation6 + $0x48] sm:$0xff]
    %v89 = vld [vmem:[#allocation6 + $0x50] sm:$0xff]
    %v90 = vld [vmem:[#allocation6 + $0x58] sm:$0xff]
    %v91 = vld [vmem:[#allocation6 + $0x60] sm:$0xff]
    %v92 = vld [vmem:[#allocation6 + $0x68] sm:$0xff]
    %v93 = vld [vmem:[#allocation6 + $0x70] sm:$0xff]
    %v94 = vld [vmem:[#allocation6 + $0x78] sm:$0xff]
    %v95 = vld [vmem:[#allocation6 + $0x80] sm:$0xff]
    %v96 = vld [vmem:[#allocation6 + $0x88] sm:$0xff]
    %v97 = vld [vmem:[#allocation6 + $0x90] sm:$0xff]
    %v98 = vld [vmem:[#allocation6 + $0x98] sm:$0xff]
    %v99 = vld [vmem:[#allocation6 + $0xa0] sm:$0xff]
    %v100 = vld [vmem:[#allocation6 + $0xa8] sm:$0xff]
    %v101 = vld [vmem:[#allocation6 + $0xb0] sm:$0xff]
    %v102 = vld [vmem:[#allocation6 + $0xb8] sm:$0xff]
    %v103 = vld [vmem:[#allocation6 + $0xc0] sm:$0xff]
    %v104 = vld [vmem:[#allocation6 + $0xc8] sm:$0xff]
    %v105 = vld [vmem:[#allocation6 + $0xd0] sm:$0xff]
    %v106 = vld [vmem:[#allocation6 + $0xd8] sm:$0xff]
    %v107 = vld [vmem:[#allocation6 + $0xe0] sm:$0xff]
    %v108 = vld [vmem:[#allocation6 + $0xe8] sm:$0xff]
    %v109 = vld [vmem:[#allocation6 + $0xf0] sm:$0xff]
    %v110 = vld [vmem:[#allocation6 + $0xf8] sm:$0xff]
    %v111 = vld [vmem:[#allocation6 + $0x100] sm:$0xff]
    %v112 = vld [vmem:[#allocation6 + $0x108] sm:$0xff]
    %v113 = vld [vmem:[#allocation6 + $0x110] sm:$0xff]
    %v114 = vld [vmem:[#allocation6 + $0x118] sm:$0xff]
    %v115 = vld [vmem:[#allocation6 + $0x120] sm:$0xff]
    %v116 = vld [vmem:[#allocation6 + $0x128] sm:$0xff]
    %v117 = vld [vmem:[#allocation6 + $0x130] sm:$0xff]
    %v118 = vld [vmem:[#allocation6 + $0x138] sm:$0xff]
    %v119 = vld [vmem:[#allocation6 + $0x140] sm:$0xff]
    %v120 = vld [vmem:[#allocation6 + $0x148] sm:$0xff]
    %v121 = vld [vmem:[#allocation6 + $0x150] sm:$0xff]
    %v122 = vld [vmem:[#allocation6 + $0x158] sm:$0xff]
    %v123 = vld [vmem:[#allocation6 + $0x160] sm:$0xff]
    %v124 = vld [vmem:[#allocation6 + $0x168] sm:$0xff]
    %v125 = vld [vmem:[#allocation6 + $0x170] sm:$0xff]
    %v126 = vld [vmem:[#allocation6 + $0x178] sm:$0xff]
    %v127 = vpack.c.bf16 %v82, %v79
    %v128 = vpack.c.bf16 %v83, %v80
    %v129 = vpack.c.bf16 %v84, %v81
    %v130 = vpack.c.bf16 %v88, %v85
    %v131 = vpack.c.bf16 %v89, %v86
    %v132 = vpack.c.bf16 %v90, %v87
    %v133 = vpack.c.bf16 %v94, %v91
    %v134 = vpack.c.bf16 %v95, %v92
    %v135 = vpack.c.bf16 %v96, %v93
    %v136 = vpack.c.bf16 %v100, %v97
    %v137 = vpack.c.bf16 %v101, %v98
    %v138 = vpack.c.bf16 %v102, %v99
    %v139 = vpack.c.bf16 %v106, %v103
    %v140 = vpack.c.bf16 %v107, %v104
    %v141 = vpack.c.bf16 %v108, %v105
    %v142 = vpack.c.bf16 %v112, %v109
    %v143 = vpack.c.bf16 %v113, %v110
    %v144 = vpack.c.bf16 %v114, %v111
    %v145 = vpack.c.bf16 %v118, %v115
    %v146 = vpack.c.bf16 %v119, %v116
    %v147 = vpack.c.bf16 %v120, %v117
    %v148 = vpack.c.bf16 %v124, %v121
    %v149 = vpack.c.bf16 %v125, %v122
    %v150 = vpack.c.bf16 %v126, %v123
    %151 = vmatpush.bf16.msra.mxu0 %v148
    %152 = vmatpush.bf16.msra.mxu0 %v145
    %153 = vmatpush.bf16.msra.mxu0 %v142
    %154 = vmatpush.bf16.msra.mxu0 %v139
    %155 = vmatpush.bf16.msra.mxu0 %v136
    %156 = vmatpush.bf16.msra.mxu0 %v133
    %157 = vmatpush.bf16.msra.mxu0 %v130
    %158 = vmatpush.bf16.msra.mxu0 %v127
    %159 = vmatmul.bf16.gmra.mxu0 %v78
    %v160 = vpop.f32.mrf.mxu0
    %v161 = vadd.f32 0.0, %v160
    %v162 = vpop.f32.mrf.mxu0
    %v163 = vadd.f32 0.0, %v162
    %164 = vdwg.mxu0
    %165 = vmatpush.bf16.msra.mxu0 %v149
    %166 = vmatpush.bf16.msra.mxu0 %v146
    %167 = vmatpush.bf16.msra.mxu0 %v143
    %168 = vmatpush.bf16.msra.mxu0 %v140
    %169 = vmatpush.bf16.msra.mxu0 %v137
    %170 = vmatpush.bf16.msra.mxu0 %v134
    %171 = vmatpush.bf16.msra.mxu0 %v131
    %172 = vmatpush.bf16.msra.mxu0 %v128
    %173 = vmatmul.bf16.gmra.mxu0 %v78
    %v174 = vpop.f32.mrf.mxu0
    %v175 = vadd.f32 0.0, %v174
    %v176 = vpop.f32.mrf.mxu0
    %v177 = vadd.f32 0.0, %v176
    %178 = vdwg.mxu0
    %179 = vmatpush.bf16.msra.mxu0 %v150
    %180 = vmatpush.bf16.msra.mxu0 %v147
    %181 = vmatpush.bf16.msra.mxu0 %v144
    %182 = vmatpush.bf16.msra.mxu0 %v141
    %183 = vmatpush.bf16.msra.mxu0 %v138
    %184 = vmatpush.bf16.msra.mxu0 %v135
    %185 = vmatpush.bf16.msra.mxu0 %v132
    %186 = vmatpush.bf16.msra.mxu0 %v129
    %187 = vmatmul.bf16.gmra.mxu0 %v78
    %v188 = vpop.f32.mrf.mxu0
    %v189 = vadd.f32 0.0, %v188
    %v190 = vpop.f32.mrf.mxu0
    %v191 = vadd.f32 0.0, %v190
    %192 = vdwg.mxu0
    %v193 = vadd.f32 %v70, %v161
    %v194 = vadd.f32 %v71, %v175
    %v195 = vadd.f32 %v72, %v189
    %v196 = vadd.f32 %v73, %v163
    %v197 = vadd.f32 %v74, %v177
    %v198 = vadd.f32 %v75, %v191
    %199 = vst [vmem:[#allocation2] sm:$0xff] %v193
    %200 = vst [vmem:[#allocation2 + $0x8] sm:$0xff] %v194
    %201 = vst [vmem:[#allocation2 + $0x10] sm:$0xff] %v195
    %202 = vst [vmem:[#allocation2 + $0x18] sm:$0xff] %v196
    %203 = vst [vmem:[#allocation2 + $0x20] sm:$0xff] %v197
    %204 = vst [vmem:[#allocation2 + $0x28] sm:$0xff] %v198
    // Predicated region
    $region30: #{tpu_custom_call.1} parent=1 // pred_check
      %p205 = pneg %p60
    $region31: #{tpu_custom_call.1} parent=1 // pred_check_branch
      %207 = sbr.rel (%p205) target = $region33
    $region32: #{tpu_custom_call.1} parent=1 // pred_region
      %v208 = vld [vmem:[#allocation2] sm:$0xff]
      %v209 = vld [vmem:[#allocation2 + $0x8] sm:$0xff]
      %v210 = vld [vmem:[#allocation2 + $0x10] sm:$0xff]
      %v211 = vld [vmem:[#allocation2 + $0x18] sm:$0xff]
      %v212 = vld [vmem:[#allocation2 + $0x20] sm:$0xff]
      %v213 = vld [vmem:[#allocation2 + $0x28] sm:$0xff]
      %v214 = vld [vmem:[#allocation8] sm:$0x7]
      %v216 = vperm.slane %v214, 0
      %v217 = vperm.slane %v214, 1
      %v218 = vperm.slane %v214, 2
      %v222 = vadd.f32 %v208, %v216
      %v223 = vadd.f32 %v209, %v217
      %v224 = vadd.f32 %v210, %v218
      %v225 = vadd.f32 %v211, %v216
      %v226 = vadd.f32 %v212, %v217
      %v227 = vadd.f32 %v213, %v218
      %228 = vst [vmem:[#allocation9] sm:$0xff] %v222
      %229 = vst [vmem:[#allocation9 + $0x8] sm:$0xff] %v223
      %230 = vst [vmem:[#allocation9 + $0x10] sm:$0xff] %v224
      %231 = vst [vmem:[#allocation9 + $0x18] sm:$0xff] %v225
      %232 = vst [vmem:[#allocation9 + $0x20] sm:$0xff] %v226
      %233 = vst [vmem:[#allocation9 + $0x28] sm:$0xff] %v227
    $region33: #{tpu_custom_call.1} parent=1 // pred_fallthru
      _
    // Predicated region
    $region34: #{tpu_custom_call.1} parent=1 // pred_check
      _
    $region35: #{tpu_custom_call.1} parent=1 // pred_check_branch
      %235 = sbr.rel (0) target = $region37
    $region36: #{tpu_custom_call.1} parent=1 // pred_region
      %237 = vsyncadd [#allocation5], 0
      %s238 = sshll.u32 [#allocation9], 4
      %s239 = int_to_ptr.vmem [resolvable:$true] %s238
      %s240 = sshll.u32 %s3, 4
      %s241 = int_to_ptr.hbm [resolvable:$true] %s240
      %246 = dma.vmem_to_hbm [thread:$0]  %s239, 768, %s241, [#allocation5], 384, 384, 24
    $region37: #{tpu_custom_call.1} parent=1 // pred_fallthru
      _
    // Predicated region
    $region38: #{tpu_custom_call.1} parent=1 // pred_check
      _
    $region39: #{tpu_custom_call.1} parent=1 // pred_check_branch
      %248 = sbr.rel (0) target = $region41
    $region40: #{tpu_custom_call.1} parent=1 // pred_region
      %250 = dma.done [#allocation5], 768
    $region41: #{tpu_custom_call.1} parent=1 // pred_fallthru
      _
    %251 = vsyncpa [#allocation4], 1
    %252 = vsyncpa [#allocation7], 1
    %253 = vsyncpa [#allocation5], 1

</llo_original>
